<compile_context>
chip_gen: v6e
topology: v6e:2x2x1
jax: 0.10.0
libtpu: 0.0.40
codegen_flags: <defaults>
</compile_context>

<pallas_src>
import jax
import jax.numpy as jnp
from jax import lax
from jax.experimental import pallas as pl
from jax.experimental.pallas import tpu as pltpu

EPS = 1e-7
MAX_TANH_ARG = 1.0 - 1e-5  # keep artanh argument strictly inside (-1, 1)


def _artanh(x):
    # 0.5*(log1p(x) - log1p(-x)) keeps relative accuracy for very small |x|.
    return 0.5 * (jnp.log1p(x) - jnp.log1p(-x))


def _expmap0(agg):
    sumsq = jnp.sum(agg * agg, axis=-1, keepdims=True)
    safe_sumsq = jnp.maximum(sumsq, EPS * EPS)
    inv_norm = lax.rsqrt(safe_sumsq)                  # EUP, no divide
    safe_norm = safe_sumsq * inv_norm                 # = max(||agg||, EPS)
    return jnp.tanh(safe_norm) * inv_norm * agg


# --------------------- Phase 1: H = logmap0(x) @ W + b ---------------------
def _linear_logmap_kernel(x_ref, w_ref, b_ref, h_ref):
    x = x_ref[...].astype(jnp.float32)                       # [TILE_N, F_in]
    sumsq = jnp.sum(x * x, axis=-1, keepdims=True)           # [TILE_N, 1]
    safe_sumsq = jnp.maximum(sumsq, EPS * EPS)
    inv_norm = lax.rsqrt(safe_sumsq)
    safe_norm = safe_sumsq * inv_norm                        # = max(||x||, EPS)
    clamped = jnp.minimum(safe_norm, MAX_TANH_ARG)
    # Cast x_tan to the matmul dtype (bf16 by default): native MXU input path.
    x_tan = ((_artanh(clamped) * inv_norm) * x).astype(w_ref.dtype)

    h = jnp.dot(x_tan, w_ref[...], preferred_element_type=jnp.float32)
    h_ref[...] = (h + b_ref[...].astype(jnp.float32)).astype(h_ref.dtype)


# ------------- Phase 2 (resident H): out = expmap0(A_panel @ H) -------------
def _agg_expmap_resident_kernel(a_ref, h_ref, o_ref):
    agg = jnp.dot(a_ref[...], h_ref[...], preferred_element_type=jnp.float32)
    o_ref[...] = _expmap0(agg).astype(o_ref.dtype)


# ------------- Phase 2 (k-tiled fallback for very large N*F_out) ------------
def _agg_expmap_tiled_kernel(a_ref, h_ref, o_ref, acc_ref):
    k = pl.program_id(1)
    part = jnp.dot(a_ref[...], h_ref[...], preferred_element_type=jnp.float32)

    @pl.when(k == 0)
    def _():
        acc_ref[...] = part            # direct write: no zeros fill / extra add

    @pl.when(k != 0)
    def _():
        acc_ref[...] += part

    @pl.when(k == pl.num_programs(1) - 1)
    def _():
        o_ref[...] = _expmap0(acc_ref[...]).astype(o_ref.dtype)


# ------------------------------ wrapper -------------------------------------
def _round_up(n, m):
    return ((n + m - 1) // m) * m


def _vmem_cap_bytes():
    try:
        return int(pltpu.get_tpu_info().vmem_capacity_bytes)
    except Exception:
        return 64 * 1024 * 1024        # smallest across v5e / v6e / v7x


def _vmem_limit(need_bytes, cap_bytes):
    # Right-sized scoped-VMEM request with headroom, bounded by ~80% physical.
    return int(min(max(need_bytes + (8 << 20), 32 << 20), int(cap_bytes * 0.80)))


def _fit_tile(n_pad, bytes_fn, budget, max_tile=512):
    t = min(max_tile, n_pad)
    while t > 128 and (n_pad % t != 0 or bytes_fn(t) > budget):
        t //= 2
    return t


def hyperbolic_gcn_layer(x, A, weight, bias, *, matmul_dtype=jnp.bfloat16):
    """x: [N, F_in], A: [N, N], weight: [F_out, F_in] (PyTorch layout), bias: [F_out]."""
    N, f_in = x.shape
    f_out = weight.shape[0]
    out_dtype = x.dtype

    n_pad = _round_up(N, 128)
    fi_pad = _round_up(f_in, 128)
    fo_pad = _round_up(f_out, 128)

    mm_isz = jnp.dtype(matmul_dtype).itemsize
    out_isz = jnp.dtype(out_dtype).itemsize

    cap = _vmem_cap_bytes()
    budget = int(cap * 0.80)

    # ---- pad / cast inputs.  The A copy is the one to avoid: it is a full
    # extra HBM round trip (~3x Phase 2's whole A read), so skip it whenever
    # A already has the padded shape / matmul dtype.  If the caller supplies a
    # pre-padded A, its padded columns must be zero. ----
    if N == n_pad and f_in == fi_pad:
        x_p = x if x.dtype == jnp.float32 else x.astype(jnp.float32)
    else:
        x_p = jnp.zeros((n_pad, fi_pad), jnp.float32).at[:N, :f_in].set(
            x.astype(jnp.float32))

    if N == n_pad:
        a_p = A if A.dtype == matmul_dtype else A.astype(matmul_dtype)
    else:
        a_p = jnp.zeros((n_pad, n_pad), matmul_dtype).at[:N, :N].set(
            A.astype(matmul_dtype))

    # W stored transposed ([F_in, F_out]) in the matmul dtype: halves W's HBM
    # and VMEM footprint and keeps Phase 1 on the native bf16 MXU path.
    w_p = jnp.zeros((fi_pad, fo_pad), matmul_dtype).at[:f_in, :f_out].set(
        weight.T.astype(matmul_dtype))
    b_p = jnp.zeros((1, fo_pad), jnp.float32).at[0, :f_out].set(
        bias.astype(jnp.float32))

    # ---- Phase 1: H = logmap0(x) @ W + b, (row, out-feature) grid ----
    tile_fo = min(fo_pad, 512)

    def p1_bytes(tn):
        return 2 * (tn * fi_pad * 4              # x tile (f32)
                    + fi_pad * tile_fo * mm_isz  # W tile
                    + 8 * tile_fo * 4            # bias tile (sublane-padded)
                    + tn * tile_fo * mm_isz)     # H out tile

    tile_n = _fit_tile(n_pad, p1_bytes, budget, max_tile=512)

    h = pl.pallas_call(
        _linear_logmap_kernel,
        out_shape=jax.ShapeDtypeStruct((n_pad, fo_pad), matmul_dtype),
        grid=(n_pad // tile_n, fo_pad // tile_fo),
        in_specs=[
            pl.BlockSpec((tile_n, fi_pad), lambda i, j: (i, 0)),
            pl.BlockSpec((fi_pad, tile_fo), lambda i, j: (0, j)),
            pl.BlockSpec((1, tile_fo), lambda i, j: (0, j)),
        ],
        out_specs=pl.BlockSpec((tile_n, tile_fo), lambda i, j: (i, j)),
        compiler_params=pltpu.CompilerParams(
            dimension_semantics=("parallel", "parallel"),
            vmem_limit_bytes=_vmem_limit(p1_bytes(tile_n), cap)),
    )(x_p, w_p, b_p)

    # ---- Phase 2: out = expmap0(A @ H) ----
    h_resident_bytes = 2 * n_pad * fo_pad * mm_isz   # counted double-buffered

    def p2_resident_bytes(ti):
        return h_resident_bytes + 2 * ti * (n_pad * mm_isz + fo_pad * out_isz)

    if p2_resident_bytes(128) <= budget:
        # H fully VMEM-resident, reduction axis collapsed: one dot per A row
        # panel, no accumulator / init branches, H read from HBM exactly once.
        tile_i = _fit_tile(n_pad, p2_resident_bytes, budget, max_tile=512)
        out_p = pl.pallas_call(
            _agg_expmap_resident_kernel,
            out_shape=jax.ShapeDtypeStruct((n_pad, fo_pad), out_dtype),
            grid=(n_pad // tile_i,),
            in_specs=[
                pl.BlockSpec((tile_i, n_pad), lambda i: (i, 0)),   # A row panel
                pl.BlockSpec((n_pad, fo_pad), lambda i: (0, 0)),   # resident H
            ],
            out_specs=pl.BlockSpec((tile_i, fo_pad), lambda i: (i, 0)),
            compiler_params=pltpu.CompilerParams(
                dimension_semantics=("parallel",),
                vmem_limit_bytes=_vmem_limit(p2_resident_bytes(tile_i), cap)),
        )(a_p, h)
    else:
        # Fallback: k-tiled reduction with an f32 accumulator (reduction axis
        # last; first k-step writes directly into the accumulator).
        def p2_tiled_bytes(t):
            return (2 * t * t * mm_isz            # A tile
                    + 2 * t * fo_pad * mm_isz     # H panel
                    + 2 * t * fo_pad * out_isz    # out tile
                    + t * fo_pad * 4)             # acc scratch
        tile = _fit_tile(n_pad, p2_tiled_bytes, budget, max_tile=512)
        out_p = pl.pallas_call(
            _agg_expmap_tiled_kernel,
            out_shape=jax.ShapeDtypeStruct((n_pad, fo_pad), out_dtype),
            grid=(n_pad // tile, n_pad // tile),           # reduction axis last
            in_specs=[
                pl.BlockSpec((tile, tile), lambda i, k: (i, k)),
                pl.BlockSpec((tile, fo_pad), lambda i, k: (k, 0)),
            ],
            out_specs=pl.BlockSpec((tile, fo_pad), lambda i, k: (i, 0)),
            scratch_shapes=[pltpu.VMEM((tile, fo_pad), jnp.float32)],
            compiler_params=pltpu.CompilerParams(
                dimension_semantics=("parallel", "arbitrary"),
                vmem_limit_bytes=_vmem_limit(p2_tiled_bytes(tile), cap)),
        )(a_p, h)

    return out_p[:N, :f_out]


# ------------------------------ reference -----------------------------------
def reference(x, A, weight, bias):
    """Pure-JAX reference identical to the PyTorch forward."""
    x = x.astype(jnp.float32)
    x_norm = jnp.sqrt(jnp.sum(x * x, axis=-1, keepdims=True))
    safe_norm = jnp.maximum(x_norm, EPS)
    clamped = jnp.minimum(safe_norm, MAX_TANH_ARG)
    x_tan = (jnp.arctanh(clamped) / safe_norm) * x
    h = x_tan @ weight.T + bias
    agg = A @ h
    v_norm = jnp.sqrt(jnp.sum(agg * agg, axis=-1, keepdims=True))
    safe_vnorm = jnp.maximum(v_norm, EPS)
    return (jnp.tanh(safe_vnorm) / safe_vnorm) * agg


if __name__ == "__main__":
    key = jax.random.PRNGKey(0)
    k_x, k_a, k_w, k_b = jax.random.split(key, 4)

    # Small shapes (padded internally to 256 nodes x 128 features).
    N, F_IN, F_OUT = 200, 32, 48

    # Node features strictly inside the unit Poincare ball.
    raw = jax.random.normal(k_x, (N, F_IN), dtype=jnp.float32)
    raw_norm = jnp.linalg.norm(raw, axis=-1, keepdims=True)
    x = 0.8 * raw / (1.0 + raw_norm)

    # Row-normalized random dense adjacency.
    a_raw = jax.random.uniform(k_a, (N, N), dtype=jnp.float32)
    A = a_raw / jnp.sum(a_raw, axis=-1, keepdims=True)

    # nn.Linear-style init: U(-1/sqrt(F_IN), 1/sqrt(F_IN)).
    bound = 1.0 / (F_IN ** 0.5)
    weight = jax.random.uniform(k_w, (F_OUT, F_IN), minval=-bound, maxval=bound,
                                dtype=jnp.float32)
    bias = jax.random.uniform(k_b, (F_OUT,), minval=-bound, maxval=bound,
                              dtype=jnp.float32)

    ref = reference(x, A, weight, bias)

    # Full-precision matmul path: tight check against the reference.
    out_f32 = jax.block_until_ready(
        hyperbolic_gcn_layer(x, A, weight, bias, matmul_dtype=jnp.float32))
    assert out_f32.shape == (N, F_OUT)
    assert jnp.allclose(out_f32, ref, atol=1e-5, rtol=1e-5), "f32 mismatch vs reference"

    # Default bf16-matmul path (halves HBM traffic on the memory-bound A @ H).
    out_bf16 = jax.block_until_ready(hyperbolic_gcn_layer(x, A, weight, bias))
    assert out_bf16.shape == (N, F_OUT)
    assert jnp.allclose(out_bf16, ref, atol=3e-2, rtol=3e-2), "bf16 mismatch vs reference"

    print("KERNEL_OK")
</pallas_src>

<mosaic_0001>
module attributes {stable_mosaic.version = 11 : i64} {
  func.func @_linear_logmap_kernel(%arg0: i32, %arg1: i32, %arg2: memref<256x128xf32, #tpu.memory_space<vmem>>, %arg3: memref<128x128xf32, #tpu.memory_space<vmem>>, %arg4: memref<1x128xf32, #tpu.memory_space<vmem>>, %arg5: memref<256x128xf32, #tpu.memory_space<vmem>>) attributes {dimension_semantics = [#tpu.dimension_semantics<parallel>, #tpu.dimension_semantics<parallel>], iteration_bounds = array<i64: 1, 1>, scalar_prefetch = 0 : i64, scratch_operands = 0 : i64, tpu.core_type = #tpu.core_type<tc>, window_params = [{transform_indices = @transform_0, window_bounds = array<i64: 256, 128>}, {transform_indices = @transform_1, window_bounds = array<i64: 128, 128>}, {transform_indices = @transform_2, window_bounds = array<i64: 1, 128>}, {transform_indices = @transform_3, window_bounds = array<i64: 256, 128>}]} {
    %c0 = arith.constant 0 : index
    %c0_0 = arith.constant 0 : index
    %0 = vector.load %arg2[%c0, %c0_0] : memref<256x128xf32, #tpu.memory_space<vmem>>, vector<256x128xf32>
    %1 = arith.mulf %0, %0 : vector<256x128xf32>
    %cst = arith.constant dense<0.000000e+00> : vector<256xf32>
    %2 = vector.multi_reduction <add>, %1, %cst [1] : vector<256x128xf32> to vector<256xf32>
    %3 = vector.shape_cast %2 : vector<256xf32> to vector<256x1xf32>
    %cst_1 = arith.constant 9.99999982E-15 : f32
    %4 = vector.broadcast %cst_1 : f32 to vector<256x1xf32>
    %5 = arith.maximumf %3, %4 : vector<256x1xf32>
    %6 = math.rsqrt %5 : vector<256x1xf32>
    %7 = arith.mulf %5, %6 : vector<256x1xf32>
    %cst_2 = arith.constant 0.999989986 : f32
    %8 = vector.broadcast %cst_2 : f32 to vector<256x1xf32>
    %9 = arith.minimumf %7, %8 : vector<256x1xf32>
    %10 = math.log1p %9 : vector<256x1xf32>
    %cst_3 = arith.constant 0.000000e+00 : f32
    %11 = vector.broadcast %cst_3 : f32 to vector<256x1xf32>
    %12 = arith.subf %11, %9 : vector<256x1xf32>
    %13 = math.log1p %12 : vector<256x1xf32>
    %14 = arith.subf %10, %13 : vector<256x1xf32>
    %cst_4 = arith.constant 5.000000e-01 : f32
    %15 = vector.broadcast %cst_4 : f32 to vector<256x1xf32>
    %16 = arith.mulf %15, %14 : vector<256x1xf32>
    %17 = arith.mulf %16, %6 : vector<256x1xf32>
    %18 = vector.broadcast %17 : vector<256x1xf32> to vector<256x128xf32>
    %19 = arith.mulf %18, %0 : vector<256x128xf32>
    %c0_5 = arith.constant 0 : index
    %c0_6 = arith.constant 0 : index
    %20 = vector.load %arg3[%c0_5, %c0_6] : memref<128x128xf32, #tpu.memory_space<vmem>>, vector<128x128xf32>
    %cst_7 = arith.constant dense<0.000000e+00> : vector<256x128xf32>
    %21 = tpu.matmul %19, %20, %cst_7 {dimension_numbers = #tpu.dot_dimension_numbers<[1], [0], [0], [1], [0, 0, 1, 1], [], []>} : vector<256x128xf32>, vector<128x128xf32>, vector<256x128xf32> -> vector<256x128xf32>
    %c0_8 = arith.constant 0 : index
    %c0_9 = arith.constant 0 : index
    %22 = vector.load %arg4[%c0_8, %c0_9] : memref<1x128xf32, #tpu.memory_space<vmem>>, vector<1x128xf32>
    %23 = vector.broadcast %22 : vector<1x128xf32> to vector<256x128xf32>
    %24 = arith.addf %21, %23 : vector<256x128xf32>
    %c0_10 = arith.constant 0 : index
    %c0_11 = arith.constant 0 : index
    %25 = vector.load %arg5[%c0_10, %c0_11] : memref<256x128xf32, #tpu.memory_space<vmem>>, vector<256x128xf32>
    tpu.vector_store %arg5[%c0_10, %c0_11], %24 {strides = array<i32>} : memref<256x128xf32, #tpu.memory_space<vmem>>, vector<256x128xf32>,
    return
  }
  func.func @transform_0(%arg0: i32, %arg1: i32) -> (i32, i32) {
    %c0_i32 = arith.constant 0 : i32
    %c0_i32_0 = arith.constant 0 : i32
    return %arg0, %c0_i32 : i32, i32
  }
  func.func @transform_1(%arg0: i32, %arg1: i32) -> (i32, i32) {
    %c0_i32 = arith.constant 0 : i32
    %c0_i32_0 = arith.constant 0 : i32
    return %c0_i32, %arg1 : i32, i32
  }
  func.func @transform_2(%arg0: i32, %arg1: i32) -> (i32, i32) {
    %c0_i32 = arith.constant 0 : i32
    %c0_i32_0 = arith.constant 0 : i32
    return %c0_i32, %arg1 : i32, i32
  }
  func.func @transform_3(%arg0: i32, %arg1: i32) -> (i32, i32) {
    %c0_i32 = arith.constant 0 : i32
    return %arg0, %arg1 : i32, i32
  }
}

</mosaic_0001>

<llo_original>
// kernel: tpu_custom_call.1
$region0: #{tpu_custom_call.1}
  #allocation0 [shape = 'u32[]', space=smem, size = 0x4, offset = 0x4, fixed_abs, tag = 'smem constant byte address 0x4 - core index']
  #allocation1 [shape = 'u32[144,128]{1,0:T(1,128)}', space=vmem, size = 0x12000, scoped, tag = 'internal scratch']
  %s0 = inlined_call_operand.hbm [shape: f32[256,128], index: 0, kind: input, shape index: {}]
  %s1 = inlined_call_operand.hbm [shape: f32[128,128], index: 1, kind: input, shape index: {}]
  %s2 = inlined_call_operand.vmem [shape: f32[1,128], index: 2, kind: input, shape index: {}]
  %s3 = inlined_call_operand.hbm [shape: f32[256,128], index: 3, kind: output, shape index: {}]
  %s4 = sld [smem:[#allocation0]]
  $region30: #{tpu_custom_call.1} parent=0
    _
  %s6 = ssub.s32 1, %s4
  %s7 = scalar_select 0, %s6, %s4
  $region1: #{tpu_custom_call.1} parent=0
    #allocation2 [shape = 'u8[131072]{0}', space=vmem, size = 0x20000, scoped, tag = 'input window, operand 0, single buffered']
    #allocation3 [shape = 's32[1]{0}', space=sflag, size = 0x4, scoped, tag = 'scoped memory for tpu_custom_call.1']
    #allocation4 [shape = 's32[1]{0}', space=sflag, size = 0x4, scoped, tag = 'scoped memory for tpu_custom_call.1']
    #allocation5 [shape = 'u8[65536]{0}', space=vmem, size = 0x10000, scoped, tag = 'input window, operand 1, single buffered']
    #allocation6 [shape = 's32[1]{0}', space=sflag, size = 0x4, scoped, tag = 'scoped memory for tpu_custom_call.1']
    #allocation7 [shape = 'u8[131072]{0}', space=vmem, size = 0x20000, scoped, tag = 'output window, operand 0, single buffered']
    %8 = vsyncpa [#allocation3], 0
    %9 = vsyncpa [#allocation6], 0
    %10 = vsyncpa [#allocation4], 0
    // Predicated region
    $region2: #{tpu_custom_call.1} parent=1 // pred_check
      _
    $region3: #{tpu_custom_call.1} parent=1 // pred_check_branch
      %12 = sbr.rel (0) target = $region5
    $region4: #{tpu_custom_call.1} parent=1 // pred_region
      %s14 = ssub.s32 4096, 4096
      %15 = vsyncadd [#allocation3], %s14
      %s16 = sshll.u32 [#allocation2], 4
      %s17 = int_to_ptr.vmem [resolvable:$true] %s16
      %22 = dma.hbm_to_vmem [thread:$0]  %s0, 4096, %s17, [#allocation3], 128, 128, 8
    $region5: #{tpu_custom_call.1} parent=1 // pred_fallthru
      _
    // Predicated region
    $region6: #{tpu_custom_call.1} parent=1 // pred_check
      _
    $region7: #{tpu_custom_call.1} parent=1 // pred_check_branch
      %24 = sbr.rel (0) target = $region9
    $region8: #{tpu_custom_call.1} parent=1 // pred_region
      %s26 = ssub.s32 2048, 2048
      %27 = vsyncadd [#allocation6], %s26
      %s28 = sshll.u32 [#allocation5], 4
      %s29 = int_to_ptr.vmem [resolvable:$true] %s28
      %34 = dma.hbm_to_vmem [thread:$0]  %s1, 2048, %s29, [#allocation6], 128, 128, 8
    $region9: #{tpu_custom_call.1} parent=1 // pred_fallthru
      _
    // Predicated region
    $region10: #{tpu_custom_call.1} parent=1 // pred_check
      _
    $region11: #{tpu_custom_call.1} parent=1 // pred_check_branch
      %36 = sbr.rel (0) target = $region13
    $region12: #{tpu_custom_call.1} parent=1 // pred_region
      _
    $region13: #{tpu_custom_call.1} parent=1 // pred_fallthru
      _
    // Predicated region
    $region14: #{tpu_custom_call.1} parent=1 // pred_check
      _
    $region15: #{tpu_custom_call.1} parent=1 // pred_check_branch
      %38 = sbr.rel (0) target = $region17
    $region16: #{tpu_custom_call.1} parent=1 // pred_region
      %39 = dma.done [#allocation3], 4096
    $region17: #{tpu_custom_call.1} parent=1 // pred_fallthru
      _
    // Predicated region
    $region18: #{tpu_custom_call.1} parent=1 // pred_check
      _
    $region19: #{tpu_custom_call.1} parent=1 // pred_check_branch
      %41 = sbr.rel (0) target = $region21
    $region20: #{tpu_custom_call.1} parent=1 // pred_region
      %42 = dma.done [#allocation6], 2048
    $region21: #{tpu_custom_call.1} parent=1 // pred_fallthru
      _
    %v43 = vld [vmem:[#allocation2] sm:$0xff]
    %v44 = vld [vmem:[#allocation2 + $0x8] sm:$0xff]
    %v45 = vld [vmem:[#allocation2 + $0x10] sm:$0xff]
    %v46 = vld [vmem:[#allocation2 + $0x18] sm:$0xff]
    %v47 = vld [vmem:[#allocation2 + $0x20] sm:$0xff]
    %v48 = vld [vmem:[#allocation2 + $0x28] sm:$0xff]
    %v49 = vld [vmem:[#allocation2 + $0x30] sm:$0xff]
    %v50 = vld [vmem:[#allocation2 + $0x38] sm:$0xff]
    %v51 = vld [vmem:[#allocation2 + $0x40] sm:$0xff]
    %v52 = vld [vmem:[#allocation2 + $0x48] sm:$0xff]
    %v53 = vld [vmem:[#allocation2 + $0x50] sm:$0xff]
    %v54 = vld [vmem:[#allocation2 + $0x58] sm:$0xff]
    %v55 = vld [vmem:[#allocation2 + $0x60] sm:$0xff]
    %v56 = vld [vmem:[#allocation2 + $0x68] sm:$0xff]
    %v57 = vld [vmem:[#allocation2 + $0x70] sm:$0xff]
    %v58 = vld [vmem:[#allocation2 + $0x78] sm:$0xff]
    %v59 = vld [vmem:[#allocation2 + $0x80] sm:$0xff]
    %v60 = vld [vmem:[#allocation2 + $0x88] sm:$0xff]
    %v61 = vld [vmem:[#allocation2 + $0x90] sm:$0xff]
    %v62 = vld [vmem:[#allocation2 + $0x98] sm:$0xff]
    %v63 = vld [vmem:[#allocation2 + $0xa0] sm:$0xff]
    %v64 = vld [vmem:[#allocation2 + $0xa8] sm:$0xff]
    %v65 = vld [vmem:[#allocation2 + $0xb0] sm:$0xff]
    %v66 = vld [vmem:[#allocation2 + $0xb8] sm:$0xff]
    %v67 = vld [vmem:[#allocation2 + $0xc0] sm:$0xff]
    %v68 = vld [vmem:[#allocation2 + $0xc8] sm:$0xff]
    %v69 = vld [vmem:[#allocation2 + $0xd0] sm:$0xff]
    %v70 = vld [vmem:[#allocation2 + $0xd8] sm:$0xff]
    %v71 = vld [vmem:[#allocation2 + $0xe0] sm:$0xff]
    %v72 = vld [vmem:[#allocation2 + $0xe8] sm:$0xff]
    %v73 = vld [vmem:[#allocation2 + $0xf0] sm:$0xff]
    %v74 = vld [vmem:[#allocation2 + $0xf8] sm:$0xff]
    %v75 = vmul.f32 %v43, %v43
    %v76 = vmul.f32 %v44, %v44
    %v77 = vmul.f32 %v45, %v45
    %v78 = vmul.f32 %v46, %v46
    %v79 = vmul.f32 %v47, %v47
    %v80 = vmul.f32 %v48, %v48
    %v81 = vmul.f32 %v49, %v49
    %v82 = vmul.f32 %v50, %v50
    %v83 = vmul.f32 %v51, %v51
    %v84 = vmul.f32 %v52, %v52
    %v85 = vmul.f32 %v53, %v53
    %v86 = vmul.f32 %v54, %v54
    %v87 = vmul.f32 %v55, %v55
    %v88 = vmul.f32 %v56, %v56
    %v89 = vmul.f32 %v57, %v57
    %v90 = vmul.f32 %v58, %v58
    %v91 = vmul.f32 %v59, %v59
    %v92 = vmul.f32 %v60, %v60
    %v93 = vmul.f32 %v61, %v61
    %v94 = vmul.f32 %v62, %v62
    %v95 = vmul.f32 %v63, %v63
    %v96 = vmul.f32 %v64, %v64
    %v97 = vmul.f32 %v65, %v65
    %v98 = vmul.f32 %v66, %v66
    %v99 = vmul.f32 %v67, %v67
    %v100 = vmul.f32 %v68, %v68
    %v101 = vmul.f32 %v69, %v69
    %v102 = vmul.f32 %v70, %v70
    %v103 = vmul.f32 %v71, %v71
    %v104 = vmul.f32 %v72, %v72
    %v105 = vmul.f32 %v73, %v73
    %v106 = vmul.f32 %v74, %v74
    %107 = vadd.xlane.f32.xlu0 %v75
    %v108 = vpop.xlane.xlu0 %107
    %109 = vadd.xlane.f32.xlu0 %v76
    %v110 = vpop.xlane.xlu0 %109
    %111 = vadd.xlane.f32.xlu0 %v77
    %v112 = vpop.xlane.xlu0 %111
    %113 = vadd.xlane.f32.xlu0 %v78
    %v114 = vpop.xlane.xlu0 %113
    %115 = vadd.xlane.f32.xlu0 %v79
    %v116 = vpop.xlane.xlu0 %115
    %117 = vadd.xlane.f32.xlu0 %v80
    %v118 = vpop.xlane.xlu0 %117
    %119 = vadd.xlane.f32.xlu0 %v81
    %v120 = vpop.xlane.xlu0 %119
    %121 = vadd.xlane.f32.xlu0 %v82
    %v122 = vpop.xlane.xlu0 %121
    %123 = vadd.xlane.f32.xlu0 %v83
    %v124 = vpop.xlane.xlu0 %123
    %125 = vadd.xlane.f32.xlu0 %v84
    %v126 = vpop.xlane.xlu0 %125
    %127 = vadd.xlane.f32.xlu0 %v85
    %v128 = vpop.xlane.xlu0 %127
    %129 = vadd.xlane.f32.xlu0 %v86
    %v130 = vpop.xlane.xlu0 %129
    %131 = vadd.xlane.f32.xlu0 %v87
    %v132 = vpop.xlane.xlu0 %131
    %133 = vadd.xlane.f32.xlu0 %v88
    %v134 = vpop.xlane.xlu0 %133
    %135 = vadd.xlane.f32.xlu0 %v89
    %v136 = vpop.xlane.xlu0 %135
    %137 = vadd.xlane.f32.xlu0 %v90
    %v138 = vpop.xlane.xlu0 %137
    %139 = vadd.xlane.f32.xlu0 %v91
    %v140 = vpop.xlane.xlu0 %139
    %141 = vadd.xlane.f32.xlu0 %v92
    %v142 = vpop.xlane.xlu0 %141
    %143 = vadd.xlane.f32.xlu0 %v93
    %v144 = vpop.xlane.xlu0 %143
    %145 = vadd.xlane.f32.xlu0 %v94
    %v146 = vpop.xlane.xlu0 %145
    %147 = vadd.xlane.f32.xlu0 %v95
    %v148 = vpop.xlane.xlu0 %147
    %149 = vadd.xlane.f32.xlu0 %v96
    %v150 = vpop.xlane.xlu0 %149
    %151 = vadd.xlane.f32.xlu0 %v97
    %v152 = vpop.xlane.xlu0 %151
    %153 = vadd.xlane.f32.xlu0 %v98
    %v154 = vpop.xlane.xlu0 %153
    %155 = vadd.xlane.f32.xlu0 %v99
    %v156 = vpop.xlane.xlu0 %155
    %157 = vadd.xlane.f32.xlu0 %v100
    %v158 = vpop.xlane.xlu0 %157
    %159 = vadd.xlane.f32.xlu0 %v101
    %v160 = vpop.xlane.xlu0 %159
    %161 = vadd.xlane.f32.xlu0 %v102
    %v162 = vpop.xlane.xlu0 %161
    %163 = vadd.xlane.f32.xlu0 %v103
    %v164 = vpop.xlane.xlu0 %163
    %165 = vadd.xlane.f32.xlu0 %v104
    %v166 = vpop.xlane.xlu0 %165
    %167 = vadd.xlane.f32.xlu0 %v105
    %v168 = vpop.xlane.xlu0 %167
    %169 = vadd.xlane.f32.xlu0 %v106
    %v170 = vpop.xlane.xlu0 %169
    %v171 = vmax.f32 %v108, 1e-14
    %v172 = vmax.f32 %v110, 1e-14
    %v173 = vmax.f32 %v112, 1e-14
    %v174 = vmax.f32 %v114, 1e-14
    %v175 = vmax.f32 %v116, 1e-14
    %v176 = vmax.f32 %v118, 1e-14
    %v177 = vmax.f32 %v120, 1e-14
    %v178 = vmax.f32 %v122, 1e-14
    %v179 = vmax.f32 %v124, 1e-14
    %v180 = vmax.f32 %v126, 1e-14
    %v181 = vmax.f32 %v128, 1e-14
    %v182 = vmax.f32 %v130, 1e-14
    %v183 = vmax.f32 %v132, 1e-14
    %v184 = vmax.f32 %v134, 1e-14
    %v185 = vmax.f32 %v136, 1e-14
    %v186 = vmax.f32 %v138, 1e-14
    %v187 = vmax.f32 %v140, 1e-14
    %v188 = vmax.f32 %v142, 1e-14
    %v189 = vmax.f32 %v144, 1e-14
    %v190 = vmax.f32 %v146, 1e-14
    %v191 = vmax.f32 %v148, 1e-14
    %v192 = vmax.f32 %v150, 1e-14
    %v193 = vmax.f32 %v152, 1e-14
    %v194 = vmax.f32 %v154, 1e-14
    %v195 = vmax.f32 %v156, 1e-14
    %v196 = vmax.f32 %v158, 1e-14
    %v197 = vmax.f32 %v160, 1e-14
    %v198 = vmax.f32 %v162, 1e-14
    %v199 = vmax.f32 %v164, 1e-14
    %v200 = vmax.f32 %v166, 1e-14
    %v201 = vmax.f32 %v168, 1e-14
    %v202 = vmax.f32 %v170, 1e-14
    %v203 = vrsqrt.pop %v171
    %v204 = vrsqrt.pop %v172
    %v205 = vrsqrt.pop %v173
    %v206 = vrsqrt.pop %v174
    %v207 = vrsqrt.pop %v175
    %v208 = vrsqrt.pop %v176
    %v209 = vrsqrt.pop %v177
    %v210 = vrsqrt.pop %v178
    %v211 = vrsqrt.pop %v179
    %v212 = vrsqrt.pop %v180
    %v213 = vrsqrt.pop %v181
    %v214 = vrsqrt.pop %v182
    %v215 = vrsqrt.pop %v183
    %v216 = vrsqrt.pop %v184
    %v217 = vrsqrt.pop %v185
    %v218 = vrsqrt.pop %v186
    %v219 = vrsqrt.pop %v187
    %v220 = vrsqrt.pop %v188
    %v221 = vrsqrt.pop %v189
    %v222 = vrsqrt.pop %v190
    %v223 = vrsqrt.pop %v191
    %v224 = vrsqrt.pop %v192
    %v225 = vrsqrt.pop %v193
    %v226 = vrsqrt.pop %v194
    %v227 = vrsqrt.pop %v195
    %v228 = vrsqrt.pop %v196
    %v229 = vrsqrt.pop %v197
    %v230 = vrsqrt.pop %v198
    %v231 = vrsqrt.pop %v199
    %v232 = vrsqrt.pop %v200
    %v233 = vrsqrt.pop %v201
    %v234 = vrsqrt.pop %v202
    %v235 = vmul.f32 %v171, %v203
    %v236 = vmul.f32 %v172, %v204
    %v237 = vmul.f32 %v173, %v205
    %v238 = vmul.f32 %v174, %v206
    %v239 = vmul.f32 %v175, %v207
    %v240 = vmul.f32 %v176, %v208
    %v241 = vmul.f32 %v177, %v209
    %v242 = vmul.f32 %v178, %v210
    %v243 = vmul.f32 %v179, %v211
    %v244 = vmul.f32 %v180, %v212
    %v245 = vmul.f32 %v181, %v213
    %v246 = vmul.f32 %v182, %v214
    %v247 = vmul.f32 %v183, %v215
    %v248 = vmul.f32 %v184, %v216
    %v249 = vmul.f32 %v185, %v217
    %v250 = vmul.f32 %v186, %v218
    %v251 = vmul.f32 %v187, %v219
    %v252 = vmul.f32 %v188, %v220
    %v253 = vmul.f32 %v189, %v221
    %v254 = vmul.f32 %v190, %v222
    %v255 = vmul.f32 %v191, %v223
    %v256 = vmul.f32 %v192, %v224
    %v257 = vmul.f32 %v193, %v225
    %v258 = vmul.f32 %v194, %v226
    %v259 = vmul.f32 %v195, %v227
    %v260 = vmul.f32 %v196, %v228
    %v261 = vmul.f32 %v197, %v229
    %v262 = vmul.f32 %v198, %v230
    %v263 = vmul.f32 %v199, %v231
    %v264 = vmul.f32 %v200, %v232
    %v265 = vmul.f32 %v201, %v233
    %v266 = vmul.f32 %v202, %v234
    %v267 = vmin.f32 %v235, 0.99999
    %v268 = vmin.f32 %v236, 0.99999
    %v269 = vmin.f32 %v237, 0.99999
    %v270 = vmin.f32 %v238, 0.99999
    %v271 = vmin.f32 %v239, 0.99999
    %v272 = vmin.f32 %v240, 0.99999
    %v273 = vmin.f32 %v241, 0.99999
    %v274 = vmin.f32 %v242, 0.99999
    %v275 = vmin.f32 %v243, 0.99999
    %v276 = vmin.f32 %v244, 0.99999
    %v277 = vmin.f32 %v245, 0.99999
    %v278 = vmin.f32 %v246, 0.99999
    %v279 = vmin.f32 %v247, 0.99999
    %v280 = vmin.f32 %v248, 0.99999
    %v281 = vmin.f32 %v249, 0.99999
    %v282 = vmin.f32 %v250, 0.99999
    %v283 = vmin.f32 %v251, 0.99999
    %v284 = vmin.f32 %v252, 0.99999
    %v285 = vmin.f32 %v253, 0.99999
    %v286 = vmin.f32 %v254, 0.99999
    %v287 = vmin.f32 %v255, 0.99999
    %v288 = vmin.f32 %v256, 0.99999
    %v289 = vmin.f32 %v257, 0.99999
    %v290 = vmin.f32 %v258, 0.99999
    %v291 = vmin.f32 %v259, 0.99999
    %v292 = vmin.f32 %v260, 0.99999
    %v293 = vmin.f32 %v261, 0.99999
    %v294 = vmin.f32 %v262, 0.99999
    %v295 = vmin.f32 %v263, 0.99999
    %v296 = vmin.f32 %v264, 0.99999
    %v297 = vmin.f32 %v265, 0.99999
    %v298 = vmin.f32 %v266, 0.99999
    %v299 = vadd.f32 %v267, 1.0
    %v300 = vlog2.pop %v299
    %v301 = vmul.f32 %v300, 0.6931472
    %v302 = vmul.f32 -0.5, %v267
    %v303 = vadd.f32 %v302, 1.0
    %v304 = vmul.f32 %v303, %v267
    %v305 = vand.u32 2147483647, %v267
    %vm306 = vcmp.lt.f32.partialorder %v305, 0.0004427343
    %v307 = vsel %vm306, %v304, %v301
    %v308 = vadd.f32 %v268, 1.0
    %v309 = vlog2.pop %v308
    %v310 = vmul.f32 %v309, 0.6931472
    %v311 = vmul.f32 -0.5, %v268
    %v312 = vadd.f32 %v311, 1.0
    %v313 = vmul.f32 %v312, %v268
    %v314 = vand.u32 2147483647, %v268
    %vm315 = vcmp.lt.f32.partialorder %v314, 0.0004427343
    %v316 = vsel %vm315, %v313, %v310
    %v317 = vadd.f32 %v269, 1.0
    %v318 = vlog2.pop %v317
    %v319 = vmul.f32 %v318, 0.6931472
    %v320 = vmul.f32 -0.5, %v269
    %v321 = vadd.f32 %v320, 1.0
    %v322 = vmul.f32 %v321, %v269
    %v323 = vand.u32 2147483647, %v269
    %vm324 = vcmp.lt.f32.partialorder %v323, 0.0004427343
    %v325 = vsel %vm324, %v322, %v319
    %v326 = vadd.f32 %v270, 1.0
    %v327 = vlog2.pop %v326
    %v328 = vmul.f32 %v327, 0.6931472
    %v329 = vmul.f32 -0.5, %v270
    %v330 = vadd.f32 %v329, 1.0
    %v331 = vmul.f32 %v330, %v270
    %v332 = vand.u32 2147483647, %v270
    %vm333 = vcmp.lt.f32.partialorder %v332, 0.0004427343
    %v334 = vsel %vm333, %v331, %v328
    %v335 = vadd.f32 %v271, 1.0
    %v336 = vlog2.pop %v335
    %v337 = vmul.f32 %v336, 0.6931472
    %v338 = vmul.f32 -0.5, %v271
    %v339 = vadd.f32 %v338, 1.0
    %v340 = vmul.f32 %v339, %v271
    %v341 = vand.u32 2147483647, %v271
    %vm342 = vcmp.lt.f32.partialorder %v341, 0.0004427343
    %v343 = vsel %vm342, %v340, %v337
    %v344 = vadd.f32 %v272, 1.0
    %v345 = vlog2.pop %v344
    %v346 = vmul.f32 %v345, 0.6931472
    %v347 = vmul.f32 -0.5, %v272
    %v348 = vadd.f32 %v347, 1.0
    %v349 = vmul.f32 %v348, %v272
    %v350 = vand.u32 2147483647, %v272
    %vm351 = vcmp.lt.f32.partialorder %v350, 0.0004427343
    %v352 = vsel %vm351, %v349, %v346
    %v353 = vadd.f32 %v273, 1.0
    %v354 = vlog2.pop %v353
    %v355 = vmul.f32 %v354, 0.6931472
    %v356 = vmul.f32 -0.5, %v273
    %v357 = vadd.f32 %v356, 1.0
    %v358 = vmul.f32 %v357, %v273
    %v359 = vand.u32 2147483647, %v273
    %vm360 = vcmp.lt.f32.partialorder %v359, 0.0004427343
    %v361 = vsel %vm360, %v358, %v355
    %v362 = vadd.f32 %v274, 1.0
    %v363 = vlog2.pop %v362
    %v364 = vmul.f32 %v363, 0.6931472
    %v365 = vmul.f32 -0.5, %v274
    %v366 = vadd.f32 %v365, 1.0
    %v367 = vmul.f32 %v366, %v274
    %v368 = vand.u32 2147483647, %v274
    %vm369 = vcmp.lt.f32.partialorder %v368, 0.0004427343
    %v370 = vsel %vm369, %v367, %v364
    %v371 = vadd.f32 %v275, 1.0
    %v372 = vlog2.pop %v371
    %v373 = vmul.f32 %v372, 0.6931472
    %v374 = vmul.f32 -0.5, %v275
    %v375 = vadd.f32 %v374, 1.0
    %v376 = vmul.f32 %v375, %v275
    %v377 = vand.u32 2147483647, %v275
    %vm378 = vcmp.lt.f32.partialorder %v377, 0.0004427343
    %v379 = vsel %vm378, %v376, %v373
    %v380 = vadd.f32 %v276, 1.0
    %v381 = vlog2.pop %v380
    %v382 = vmul.f32 %v381, 0.6931472
    %v383 = vmul.f32 -0.5, %v276
    %v384 = vadd.f32 %v383, 1.0
    %v385 = vmul.f32 %v384, %v276
    %v386 = vand.u32 2147483647, %v276
    %vm387 = vcmp.lt.f32.partialorder %v386, 0.0004427343
    %v388 = vsel %vm387, %v385, %v382
    %v389 = vadd.f32 %v277, 1.0
    %v390 = vlog2.pop %v389
    %v391 = vmul.f32 %v390, 0.6931472
    %v392 = vmul.f32 -0.5, %v277
    %v393 = vadd.f32 %v392, 1.0
    %v394 = vmul.f32 %v393, %v277
    %v395 = vand.u32 2147483647, %v277
    %vm396 = vcmp.lt.f32.partialorder %v395, 0.0004427343
    %v397 = vsel %vm396, %v394, %v391
    %v398 = vadd.f32 %v278, 1.0
    %v399 = vlog2.pop %v398
    %v400 = vmul.f32 %v399, 0.6931472
    %v401 = vmul.f32 -0.5, %v278
    %v402 = vadd.f32 %v401, 1.0
    %v403 = vmul.f32 %v402, %v278
    %v404 = vand.u32 2147483647, %v278
    %vm405 = vcmp.lt.f32.partialorder %v404, 0.0004427343
    %v406 = vsel %vm405, %v403, %v400
    %v407 = vadd.f32 %v279, 1.0
    %v408 = vlog2.pop %v407
    %v409 = vmul.f32 %v408, 0.6931472
    %v410 = vmul.f32 -0.5, %v279
    %v411 = vadd.f32 %v410, 1.0
    %v412 = vmul.f32 %v411, %v279
    %v413 = vand.u32 2147483647, %v279
    %vm414 = vcmp.lt.f32.partialorder %v413, 0.0004427343
    %v415 = vsel %vm414, %v412, %v409
    %v416 = vadd.f32 %v280, 1.0
    %v417 = vlog2.pop %v416
    %v418 = vmul.f32 %v417, 0.6931472
    %v419 = vmul.f32 -0.5, %v280
    %v420 = vadd.f32 %v419, 1.0
    %v421 = vmul.f32 %v420, %v280
    %v422 = vand.u32 2147483647, %v280
    %vm423 = vcmp.lt.f32.partialorder %v422, 0.0004427343
    %v424 = vsel %vm423, %v421, %v418
    %v425 = vadd.f32 %v281, 1.0
    %v426 = vlog2.pop %v425
    %v427 = vmul.f32 %v426, 0.6931472
    %v428 = vmul.f32 -0.5, %v281
    %v429 = vadd.f32 %v428, 1.0
    %v430 = vmul.f32 %v429, %v281
    %v431 = vand.u32 2147483647, %v281
    %vm432 = vcmp.lt.f32.partialorder %v431, 0.0004427343
    %v433 = vsel %vm432, %v430, %v427
    %v434 = vadd.f32 %v282, 1.0
    %v435 = vlog2.pop %v434
    %v436 = vmul.f32 %v435, 0.6931472
    %v437 = vmul.f32 -0.5, %v282
    %v438 = vadd.f32 %v437, 1.0
    %v439 = vmul.f32 %v438, %v282
    %v440 = vand.u32 2147483647, %v282
    %vm441 = vcmp.lt.f32.partialorder %v440, 0.0004427343
    %v442 = vsel %vm441, %v439, %v436
    %v443 = vadd.f32 %v283, 1.0
    %v444 = vlog2.pop %v443
    %v445 = vmul.f32 %v444, 0.6931472
    %v446 = vmul.f32 -0.5, %v283
    %v447 = vadd.f32 %v446, 1.0
    %v448 = vmul.f32 %v447, %v283
    %v449 = vand.u32 2147483647, %v283
    %vm450 = vcmp.lt.f32.partialorder %v449, 0.0004427343
    %v451 = vsel %vm450, %v448, %v445
    %v452 = vadd.f32 %v284, 1.0
    %v453 = vlog2.pop %v452
    %v454 = vmul.f32 %v453, 0.6931472
    %v455 = vmul.f32 -0.5, %v284
    %v456 = vadd.f32 %v455, 1.0
    %v457 = vmul.f32 %v456, %v284
    %v458 = vand.u32 2147483647, %v284
    %vm459 = vcmp.lt.f32.partialorder %v458, 0.0004427343
    %v460 = vsel %vm459, %v457, %v454
    %v461 = vadd.f32 %v285, 1.0
    %v462 = vlog2.pop %v461
    %v463 = vmul.f32 %v462, 0.6931472
    %v464 = vmul.f32 -0.5, %v285
    %v465 = vadd.f32 %v464, 1.0
    %v466 = vmul.f32 %v465, %v285
    %v467 = vand.u32 2147483647, %v285
    %vm468 = vcmp.lt.f32.partialorder %v467, 0.0004427343
    %v469 = vsel %vm468, %v466, %v463
    %v470 = vadd.f32 %v286, 1.0
    %v471 = vlog2.pop %v470
    %v472 = vmul.f32 %v471, 0.6931472
    %v473 = vmul.f32 -0.5, %v286
    %v474 = vadd.f32 %v473, 1.0
    %v475 = vmul.f32 %v474, %v286
    %v476 = vand.u32 2147483647, %v286
    %vm477 = vcmp.lt.f32.partialorder %v476, 0.0004427343
    %v478 = vsel %vm477, %v475, %v472
    %v479 = vadd.f32 %v287, 1.0
    %v480 = vlog2.pop %v479
    %v481 = vmul.f32 %v480, 0.6931472
    %v482 = vmul.f32 -0.5, %v287
    %v483 = vadd.f32 %v482, 1.0
    %v484 = vmul.f32 %v483, %v287
    %v485 = vand.u32 2147483647, %v287
    %vm486 = vcmp.lt.f32.partialorder %v485, 0.0004427343
    %v487 = vsel %vm486, %v484, %v481
    %v488 = vadd.f32 %v288, 1.0
    %v489 = vlog2.pop %v488
    %v490 = vmul.f32 %v489, 0.6931472
    %v491 = vmul.f32 -0.5, %v288
    %v492 = vadd.f32 %v491, 1.0
    %v493 = vmul.f32 %v492, %v288
    %v494 = vand.u32 2147483647, %v288
    %vm495 = vcmp.lt.f32.partialorder %v494, 0.0004427343
    %v496 = vsel %vm495, %v493, %v490
    %v497 = vadd.f32 %v289, 1.0
    %v498 = vlog2.pop %v497
    %v499 = vmul.f32 %v498, 0.6931472
    %v500 = vmul.f32 -0.5, %v289
    %v501 = vadd.f32 %v500, 1.0
    %v502 = vmul.f32 %v501, %v289
    %v503 = vand.u32 2147483647, %v289
    %vm504 = vcmp.lt.f32.partialorder %v503, 0.0004427343
    %v505 = vsel %vm504, %v502, %v499
    %v506 = vadd.f32 %v290, 1.0
    %v507 = vlog2.pop %v506
    %v508 = vmul.f32 %v507, 0.6931472
    %v509 = vmul.f32 -0.5, %v290
    %v510 = vadd.f32 %v509, 1.0
    %v511 = vmul.f32 %v510, %v290
    %v512 = vand.u32 2147483647, %v290
    %vm513 = vcmp.lt.f32.partialorder %v512, 0.0004427343
    %v514 = vsel %vm513, %v511, %v508
    %v515 = vadd.f32 %v291, 1.0
    %v516 = vlog2.pop %v515
    %v517 = vmul.f32 %v516, 0.6931472
    %v518 = vmul.f32 -0.5, %v291
    %v519 = vadd.f32 %v518, 1.0
    %v520 = vmul.f32 %v519, %v291
    %v521 = vand.u32 2147483647, %v291
    %vm522 = vcmp.lt.f32.partialorder %v521, 0.0004427343
    %v523 = vsel %vm522, %v520, %v517
    %v524 = vadd.f32 %v292, 1.0
    %v525 = vlog2.pop %v524
    %v526 = vmul.f32 %v525, 0.6931472
    %v527 = vmul.f32 -0.5, %v292
    %v528 = vadd.f32 %v527, 1.0
    %v529 = vmul.f32 %v528, %v292
    %v530 = vand.u32 2147483647, %v292
    %vm531 = vcmp.lt.f32.partialorder %v530, 0.0004427343
    %v532 = vsel %vm531, %v529, %v526
    %v533 = vadd.f32 %v293, 1.0
    %v534 = vlog2.pop %v533
    %v535 = vmul.f32 %v534, 0.6931472
    %v536 = vmul.f32 -0.5, %v293
    %v537 = vadd.f32 %v536, 1.0
    %v538 = vmul.f32 %v537, %v293
    %v539 = vand.u32 2147483647, %v293
    %vm540 = vcmp.lt.f32.partialorder %v539, 0.0004427343
    %v541 = vsel %vm540, %v538, %v535
    %v542 = vadd.f32 %v294, 1.0
    %v543 = vlog2.pop %v542
    %v544 = vmul.f32 %v543, 0.6931472
    %v545 = vmul.f32 -0.5, %v294
    %v546 = vadd.f32 %v545, 1.0
    %v547 = vmul.f32 %v546, %v294
    %v548 = vand.u32 2147483647, %v294
    %vm549 = vcmp.lt.f32.partialorder %v548, 0.0004427343
    %v550 = vsel %vm549, %v547, %v544
    %v551 = vadd.f32 %v295, 1.0
    %v552 = vlog2.pop %v551
    %v553 = vmul.f32 %v552, 0.6931472
    %v554 = vmul.f32 -0.5, %v295
    %v555 = vadd.f32 %v554, 1.0
    %v556 = vmul.f32 %v555, %v295
    %v557 = vand.u32 2147483647, %v295
    %vm558 = vcmp.lt.f32.partialorder %v557, 0.0004427343
    %v559 = vsel %vm558, %v556, %v553
    %v560 = vadd.f32 %v296, 1.0
    %v561 = vlog2.pop %v560
    %v562 = vmul.f32 %v561, 0.6931472
    %v563 = vmul.f32 -0.5, %v296
    %v564 = vadd.f32 %v563, 1.0
    %v565 = vmul.f32 %v564, %v296
    %v566 = vand.u32 2147483647, %v296
    %vm567 = vcmp.lt.f32.partialorder %v566, 0.0004427343
    %v568 = vsel %vm567, %v565, %v562
    %v569 = vadd.f32 %v297, 1.0
    %v570 = vlog2.pop %v569
    %v571 = vmul.f32 %v570, 0.6931472
    %v572 = vmul.f32 -0.5, %v297
    %v573 = vadd.f32 %v572, 1.0
    %v574 = vmul.f32 %v573, %v297
    %v575 = vand.u32 2147483647, %v297
    %vm576 = vcmp.lt.f32.partialorder %v575, 0.0004427343
    %v577 = vsel %vm576, %v574, %v571
    %v578 = vadd.f32 %v298, 1.0
    %v579 = vlog2.pop %v578
    %v580 = vmul.f32 %v579, 0.6931472
    %v581 = vmul.f32 -0.5, %v298
    %v582 = vadd.f32 %v581, 1.0
    %v583 = vmul.f32 %v582, %v298
    %v584 = vand.u32 2147483647, %v298
    %vm585 = vcmp.lt.f32.partialorder %v584, 0.0004427343
    %v586 = vsel %vm585, %v583, %v580
    %v587 = vsub.f32 0.0, %v267
    %v588 = vsub.f32 0.0, %v268
    %v589 = vsub.f32 0.0, %v269
    %v590 = vsub.f32 0.0, %v270
    %v591 = vsub.f32 0.0, %v271
    %v592 = vsub.f32 0.0, %v272
    %v593 = vsub.f32 0.0, %v273
    %v594 = vsub.f32 0.0, %v274
    %v595 = vsub.f32 0.0, %v275
    %v596 = vsub.f32 0.0, %v276
    %v597 = vsub.f32 0.0, %v277
    %v598 = vsub.f32 0.0, %v278
    %v599 = vsub.f32 0.0, %v279
    %v600 = vsub.f32 0.0, %v280
    %v601 = vsub.f32 0.0, %v281
    %v602 = vsub.f32 0.0, %v282
    %v603 = vsub.f32 0.0, %v283
    %v604 = vsub.f32 0.0, %v284
    %v605 = vsub.f32 0.0, %v285
    %v606 = vsub.f32 0.0, %v286
    %v607 = vsub.f32 0.0, %v287
    %v608 = vsub.f32 0.0, %v288
    %v609 = vsub.f32 0.0, %v289
    %v610 = vsub.f32 0.0, %v290
    %v611 = vsub.f32 0.0, %v291
    %v612 = vsub.f32 0.0, %v292
    %v613 = vsub.f32 0.0, %v293
    %v614 = vsub.f32 0.0, %v294
    %v615 = vsub.f32 0.0, %v295
    %v616 = vsub.f32 0.0, %v296
    %v617 = vsub.f32 0.0, %v297
    %v618 = vsub.f32 0.0, %v298
    %v619 = vadd.f32 %v587, 1.0
    %v620 = vlog2.pop %v619
    %v621 = vmul.f32 %v620, 0.6931472
    %v622 = vmul.f32 -0.5, %v587
    %v623 = vadd.f32 %v622, 1.0
    %v624 = vmul.f32 %v623, %v587
    %v625 = vand.u32 2147483647, %v587
    %vm626 = vcmp.lt.f32.partialorder %v625, 0.0004427343
    %v627 = vsel %vm626, %v624, %v621
    %v628 = vadd.f32 %v588, 1.0
    %v629 = vlog2.pop %v628
    %v630 = vmul.f32 %v629, 0.6931472
    %v631 = vmul.f32 -0.5, %v588
    %v632 = vadd.f32 %v631, 1.0
    %v633 = vmul.f32 %v632, %v588
    %v634 = vand.u32 2147483647, %v588
    %vm635 = vcmp.lt.f32.partialorder %v634, 0.0004427343
    %v636 = vsel %vm635, %v633, %v630
    %v637 = vadd.f32 %v589, 1.0
    %v638 = vlog2.pop %v637
    %v639 = vmul.f32 %v638, 0.6931472
    %v640 = vmul.f32 -0.5, %v589
    %v641 = vadd.f32 %v640, 1.0
    %v642 = vmul.f32 %v641, %v589
    %v643 = vand.u32 2147483647, %v589
    %vm644 = vcmp.lt.f32.partialorder %v643, 0.0004427343
    %v645 = vsel %vm644, %v642, %v639
    %v646 = vadd.f32 %v590, 1.0
    %v647 = vlog2.pop %v646
    %v648 = vmul.f32 %v647, 0.6931472
    %v649 = vmul.f32 -0.5, %v590
    %v650 = vadd.f32 %v649, 1.0
    %v651 = vmul.f32 %v650, %v590
    %v652 = vand.u32 2147483647, %v590
    %vm653 = vcmp.lt.f32.partialorder %v652, 0.0004427343
    %v654 = vsel %vm653, %v651, %v648
    %v655 = vadd.f32 %v591, 1.0
    %v656 = vlog2.pop %v655
    %v657 = vmul.f32 %v656, 0.6931472
    %v658 = vmul.f32 -0.5, %v591
    %v659 = vadd.f32 %v658, 1.0
    %v660 = vmul.f32 %v659, %v591
    %v661 = vand.u32 2147483647, %v591
    %vm662 = vcmp.lt.f32.partialorder %v661, 0.0004427343
    %v663 = vsel %vm662, %v660, %v657
    %v664 = vadd.f32 %v592, 1.0
    %v665 = vlog2.pop %v664
    %v666 = vmul.f32 %v665, 0.6931472
    %v667 = vmul.f32 -0.5, %v592
    %v668 = vadd.f32 %v667, 1.0
    %v669 = vmul.f32 %v668, %v592
    %v670 = vand.u32 2147483647, %v592
    %vm671 = vcmp.lt.f32.partialorder %v670, 0.0004427343
    %v672 = vsel %vm671, %v669, %v666
    %v673 = vadd.f32 %v593, 1.0
    %v674 = vlog2.pop %v673
    %v675 = vmul.f32 %v674, 0.6931472
    %v676 = vmul.f32 -0.5, %v593
    %v677 = vadd.f32 %v676, 1.0
    %v678 = vmul.f32 %v677, %v593
    %v679 = vand.u32 2147483647, %v593
    %vm680 = vcmp.lt.f32.partialorder %v679, 0.0004427343
    %v681 = vsel %vm680, %v678, %v675
    %v682 = vadd.f32 %v594, 1.0
    %v683 = vlog2.pop %v682
    %v684 = vmul.f32 %v683, 0.6931472
    %v685 = vmul.f32 -0.5, %v594
    %v686 = vadd.f32 %v685, 1.0
    %v687 = vmul.f32 %v686, %v594
    %v688 = vand.u32 2147483647, %v594
    %vm689 = vcmp.lt.f32.partialorder %v688, 0.0004427343
    %v690 = vsel %vm689, %v687, %v684
    %v691 = vadd.f32 %v595, 1.0
    %v692 = vlog2.pop %v691
    %v693 = vmul.f32 %v692, 0.6931472
    %v694 = vmul.f32 -0.5, %v595
    %v695 = vadd.f32 %v694, 1.0
    %v696 = vmul.f32 %v695, %v595
    %v697 = vand.u32 2147483647, %v595
    %vm698 = vcmp.lt.f32.partialorder %v697, 0.0004427343
    %v699 = vsel %vm698, %v696, %v693
    %v700 = vadd.f32 %v596, 1.0
    %v701 = vlog2.pop %v700
    %v702 = vmul.f32 %v701, 0.6931472
    %v703 = vmul.f32 -0.5, %v596
    %v704 = vadd.f32 %v703, 1.0
    %v705 = vmul.f32 %v704, %v596
    %v706 = vand.u32 2147483647, %v596
    %vm707 = vcmp.lt.f32.partialorder %v706, 0.0004427343
    %v708 = vsel %vm707, %v705, %v702
    %v709 = vadd.f32 %v597, 1.0
    %v710 = vlog2.pop %v709
    %v711 = vmul.f32 %v710, 0.6931472
    %v712 = vmul.f32 -0.5, %v597
    %v713 = vadd.f32 %v712, 1.0
    %v714 = vmul.f32 %v713, %v597
    %v715 = vand.u32 2147483647, %v597
    %vm716 = vcmp.lt.f32.partialorder %v715, 0.0004427343
    %v717 = vsel %vm716, %v714, %v711
    %v718 = vadd.f32 %v598, 1.0
    %v719 = vlog2.pop %v718
    %v720 = vmul.f32 %v719, 0.6931472
    %v721 = vmul.f32 -0.5, %v598
    %v722 = vadd.f32 %v721, 1.0
    %v723 = vmul.f32 %v722, %v598
    %v724 = vand.u32 2147483647, %v598
    %vm725 = vcmp.lt.f32.partialorder %v724, 0.0004427343
    %v726 = vsel %vm725, %v723, %v720
    %v727 = vadd.f32 %v599, 1.0
    %v728 = vlog2.pop %v727
    %v729 = vmul.f32 %v728, 0.6931472
    %v730 = vmul.f32 -0.5, %v599
    %v731 = vadd.f32 %v730, 1.0
    %v732 = vmul.f32 %v731, %v599
    %v733 = vand.u32 2147483647, %v599
    %vm734 = vcmp.lt.f32.partialorder %v733, 0.0004427343
    %v735 = vsel %vm734, %v732, %v729
    %v736 = vadd.f32 %v600, 1.0
    %v737 = vlog2.pop %v736
    %v738 = vmul.f32 %v737, 0.6931472
    %v739 = vmul.f32 -0.5, %v600
    %v740 = vadd.f32 %v739, 1.0
    %v741 = vmul.f32 %v740, %v600
    %v742 = vand.u32 2147483647, %v600
    %vm743 = vcmp.lt.f32.partialorder %v742, 0.0004427343
    %v744 = vsel %vm743, %v741, %v738
    %v745 = vadd.f32 %v601, 1.0
    %v746 = vlog2.pop %v745
    %v747 = vmul.f32 %v746, 0.6931472
    %v748 = vmul.f32 -0.5, %v601
    %v749 = vadd.f32 %v748, 1.0
    %v750 = vmul.f32 %v749, %v601
    %v751 = vand.u32 2147483647, %v601
    %vm752 = vcmp.lt.f32.partialorder %v751, 0.0004427343
    %v753 = vsel %vm752, %v750, %v747
    %v754 = vadd.f32 %v602, 1.0
    %v755 = vlog2.pop %v754
    %v756 = vmul.f32 %v755, 0.6931472
    %v757 = vmul.f32 -0.5, %v602
    %v758 = vadd.f32 %v757, 1.0
    %v759 = vmul.f32 %v758, %v602
    %v760 = vand.u32 2147483647, %v602
    %vm761 = vcmp.lt.f32.partialorder %v760, 0.0004427343
    %v762 = vsel %vm761, %v759, %v756
    %v763 = vadd.f32 %v603, 1.0
    %v764 = vlog2.pop %v763
    %v765 = vmul.f32 %v764, 0.6931472
    %v766 = vmul.f32 -0.5, %v603
    %v767 = vadd.f32 %v766, 1.0
    %v768 = vmul.f32 %v767, %v603
    %v769 = vand.u32 2147483647, %v603
    %vm770 = vcmp.lt.f32.partialorder %v769, 0.0004427343
    %v771 = vsel %vm770, %v768, %v765
    %v772 = vadd.f32 %v604, 1.0
    %v773 = vlog2.pop %v772
    %v774 = vmul.f32 %v773, 0.6931472
    %v775 = vmul.f32 -0.5, %v604
    %v776 = vadd.f32 %v775, 1.0
    %v777 = vmul.f32 %v776, %v604
    %v778 = vand.u32 2147483647, %v604
    %vm779 = vcmp.lt.f32.partialorder %v778, 0.0004427343
    %v780 = vsel %vm779, %v777, %v774
    %v781 = vadd.f32 %v605, 1.0
    %v782 = vlog2.pop %v781
    %v783 = vmul.f32 %v782, 0.6931472
    %v784 = vmul.f32 -0.5, %v605
    %v785 = vadd.f32 %v784, 1.0
    %v786 = vmul.f32 %v785, %v605
    %v787 = vand.u32 2147483647, %v605
    %vm788 = vcmp.lt.f32.partialorder %v787, 0.0004427343
    %v789 = vsel %vm788, %v786, %v783
    %v790 = vadd.f32 %v606, 1.0
    %v791 = vlog2.pop %v790
    %v792 = vmul.f32 %v791, 0.6931472
    %v793 = vmul.f32 -0.5, %v606
    %v794 = vadd.f32 %v793, 1.0
    %v795 = vmul.f32 %v794, %v606
    %v796 = vand.u32 2147483647, %v606
    %vm797 = vcmp.lt.f32.partialorder %v796, 0.0004427343
    %v798 = vsel %vm797, %v795, %v792
    %v799 = vadd.f32 %v607, 1.0
    %v800 = vlog2.pop %v799
    %v801 = vmul.f32 %v800, 0.6931472
    %v802 = vmul.f32 -0.5, %v607
    %v803 = vadd.f32 %v802, 1.0
    %v804 = vmul.f32 %v803, %v607
    %v805 = vand.u32 2147483647, %v607
    %vm806 = vcmp.lt.f32.partialorder %v805, 0.0004427343
    %v807 = vsel %vm806, %v804, %v801
    %v808 = vadd.f32 %v608, 1.0
    %v809 = vlog2.pop %v808
    %v810 = vmul.f32 %v809, 0.6931472
    %v811 = vmul.f32 -0.5, %v608
    %v812 = vadd.f32 %v811, 1.0
    %v813 = vmul.f32 %v812, %v608
    %v814 = vand.u32 2147483647, %v608
    %vm815 = vcmp.lt.f32.partialorder %v814, 0.0004427343
    %v816 = vsel %vm815, %v813, %v810
    %v817 = vadd.f32 %v609, 1.0
    %v818 = vlog2.pop %v817
    %v819 = vmul.f32 %v818, 0.6931472
    %v820 = vmul.f32 -0.5, %v609
    %v821 = vadd.f32 %v820, 1.0
    %v822 = vmul.f32 %v821, %v609
    %v823 = vand.u32 2147483647, %v609
    %vm824 = vcmp.lt.f32.partialorder %v823, 0.0004427343
    %v825 = vsel %vm824, %v822, %v819
    %v826 = vadd.f32 %v610, 1.0
    %v827 = vlog2.pop %v826
    %v828 = vmul.f32 %v827, 0.6931472
    %v829 = vmul.f32 -0.5, %v610
    %v830 = vadd.f32 %v829, 1.0
    %v831 = vmul.f32 %v830, %v610
    %v832 = vand.u32 2147483647, %v610
    %vm833 = vcmp.lt.f32.partialorder %v832, 0.0004427343
    %v834 = vsel %vm833, %v831, %v828
    %v835 = vadd.f32 %v611, 1.0
    %v836 = vlog2.pop %v835
    %v837 = vmul.f32 %v836, 0.6931472
    %v838 = vmul.f32 -0.5, %v611
    %v839 = vadd.f32 %v838, 1.0
    %v840 = vmul.f32 %v839, %v611
    %v841 = vand.u32 2147483647, %v611
    %vm842 = vcmp.lt.f32.partialorder %v841, 0.0004427343
    %v843 = vsel %vm842, %v840, %v837
    %v844 = vadd.f32 %v612, 1.0
    %v845 = vlog2.pop %v844
    %v846 = vmul.f32 %v845, 0.6931472
    %v847 = vmul.f32 -0.5, %v612
    %v848 = vadd.f32 %v847, 1.0
    %v849 = vmul.f32 %v848, %v612
    %v850 = vand.u32 2147483647, %v612
    %vm851 = vcmp.lt.f32.partialorder %v850, 0.0004427343
    %v852 = vsel %vm851, %v849, %v846
    %v853 = vadd.f32 %v613, 1.0
    %v854 = vlog2.pop %v853
    %v855 = vmul.f32 %v854, 0.6931472
    %v856 = vmul.f32 -0.5, %v613
    %v857 = vadd.f32 %v856, 1.0
    %v858 = vmul.f32 %v857, %v613
    %v859 = vand.u32 2147483647, %v613
    %vm860 = vcmp.lt.f32.partialorder %v859, 0.0004427343
    %v861 = vsel %vm860, %v858, %v855
    %v862 = vadd.f32 %v614, 1.0
    %v863 = vlog2.pop %v862
    %v864 = vmul.f32 %v863, 0.6931472
    %v865 = vmul.f32 -0.5, %v614
    %v866 = vadd.f32 %v865, 1.0
    %v867 = vmul.f32 %v866, %v614
    %v868 = vand.u32 2147483647, %v614
    %vm869 = vcmp.lt.f32.partialorder %v868, 0.0004427343
    %v870 = vsel %vm869, %v867, %v864
    %v871 = vadd.f32 %v615, 1.0
    %v872 = vlog2.pop %v871
    %v873 = vmul.f32 %v872, 0.6931472
    %v874 = vmul.f32 -0.5, %v615
    %v875 = vadd.f32 %v874, 1.0
    %v876 = vmul.f32 %v875, %v615
    %v877 = vand.u32 2147483647, %v615
    %vm878 = vcmp.lt.f32.partialorder %v877, 0.0004427343
    %v879 = vsel %vm878, %v876, %v873
    %v880 = vadd.f32 %v616, 1.0
    %v881 = vlog2.pop %v880
    %v882 = vmul.f32 %v881, 0.6931472
    %v883 = vmul.f32 -0.5, %v616
    %v884 = vadd.f32 %v883, 1.0
    %v885 = vmul.f32 %v884, %v616
    %v886 = vand.u32 2147483647, %v616
    %vm887 = vcmp.lt.f32.partialorder %v886, 0.0004427343
    %v888 = vsel %vm887, %v885, %v882
    %v889 = vadd.f32 %v617, 1.0
    %v890 = vlog2.pop %v889
    %v891 = vmul.f32 %v890, 0.6931472
    %v892 = vmul.f32 -0.5, %v617
    %v893 = vadd.f32 %v892, 1.0
    %v894 = vmul.f32 %v893, %v617
    %v895 = vand.u32 2147483647, %v617
    %vm896 = vcmp.lt.f32.partialorder %v895, 0.0004427343
    %v897 = vsel %vm896, %v894, %v891
    %v898 = vadd.f32 %v618, 1.0
    %v899 = vlog2.pop %v898
    %v900 = vmul.f32 %v899, 0.6931472
    %v901 = vmul.f32 -0.5, %v618
    %v902 = vadd.f32 %v901, 1.0
    %v903 = vmul.f32 %v902, %v618
    %v904 = vand.u32 2147483647, %v618
    %vm905 = vcmp.lt.f32.partialorder %v904, 0.0004427343
    %v906 = vsel %vm905, %v903, %v900
    %v907 = vsub.f32 %v307, %v627
    %v908 = vsub.f32 %v316, %v636
    %v909 = vsub.f32 %v325, %v645
    %v910 = vsub.f32 %v334, %v654
    %v911 = vsub.f32 %v343, %v663
    %v912 = vsub.f32 %v352, %v672
    %v913 = vsub.f32 %v361, %v681
    %v914 = vsub.f32 %v370, %v690
    %v915 = vsub.f32 %v379, %v699
    %v916 = vsub.f32 %v388, %v708
    %v917 = vsub.f32 %v397, %v717
    %v918 = vsub.f32 %v406, %v726
    %v919 = vsub.f32 %v415, %v735
    %v920 = vsub.f32 %v424, %v744
    %v921 = vsub.f32 %v433, %v753
    %v922 = vsub.f32 %v442, %v762
    %v923 = vsub.f32 %v451, %v771
    %v924 = vsub.f32 %v460, %v780
    %v925 = vsub.f32 %v469, %v789
    %v926 = vsub.f32 %v478, %v798
    %v927 = vsub.f32 %v487, %v807
    %v928 = vsub.f32 %v496, %v816
    %v929 = vsub.f32 %v505, %v825
    %v930 = vsub.f32 %v514, %v834
    %v931 = vsub.f32 %v523, %v843
    %v932 = vsub.f32 %v532, %v852
    %v933 = vsub.f32 %v541, %v861
    %v934 = vsub.f32 %v550, %v870
    %v935 = vsub.f32 %v559, %v879
    %v936 = vsub.f32 %v568, %v888
    %v937 = vsub.f32 %v577, %v897
    %v938 = vsub.f32 %v586, %v906
    %v939 = vmul.f32 %v907, 0.5
    %v940 = vmul.f32 %v908, 0.5
    %v941 = vmul.f32 %v909, 0.5
    %v942 = vmul.f32 %v910, 0.5
    %v943 = vmul.f32 %v911, 0.5
    %v944 = vmul.f32 %v912, 0.5
    %v945 = vmul.f32 %v913, 0.5
    %v946 = vmul.f32 %v914, 0.5
    %v947 = vmul.f32 %v915, 0.5
    %v948 = vmul.f32 %v916, 0.5
    %v949 = vmul.f32 %v917, 0.5
    %v950 = vmul.f32 %v918, 0.5
    %v951 = vmul.f32 %v919, 0.5
    %v952 = vmul.f32 %v920, 0.5
    %v953 = vmul.f32 %v921, 0.5
    %v954 = vmul.f32 %v922, 0.5
    %v955 = vmul.f32 %v923, 0.5
    %v956 = vmul.f32 %v924, 0.5
    %v957 = vmul.f32 %v925, 0.5
    %v958 = vmul.f32 %v926, 0.5
    %v959 = vmul.f32 %v927, 0.5
    %v960 = vmul.f32 %v928, 0.5
    %v961 = vmul.f32 %v929, 0.5
    %v962 = vmul.f32 %v930, 0.5
    %v963 = vmul.f32 %v931, 0.5
    %v964 = vmul.f32 %v932, 0.5
    %v965 = vmul.f32 %v933, 0.5
    %v966 = vmul.f32 %v934, 0.5
    %v967 = vmul.f32 %v935, 0.5
    %v968 = vmul.f32 %v936, 0.5
    %v969 = vmul.f32 %v937, 0.5
    %v970 = vmul.f32 %v938, 0.5
    %v971 = vmul.f32 %v939, %v203
    %v972 = vmul.f32 %v940, %v204
    %v973 = vmul.f32 %v941, %v205
    %v974 = vmul.f32 %v942, %v206
    %v975 = vmul.f32 %v943, %v207
    %v976 = vmul.f32 %v944, %v208
    %v977 = vmul.f32 %v945, %v209
    %v978 = vmul.f32 %v946, %v210
    %v979 = vmul.f32 %v947, %v211
    %v980 = vmul.f32 %v948, %v212
    %v981 = vmul.f32 %v949, %v213
    %v982 = vmul.f32 %v950, %v214
    %v983 = vmul.f32 %v951, %v215
    %v984 = vmul.f32 %v952, %v216
    %v985 = vmul.f32 %v953, %v217
    %v986 = vmul.f32 %v954, %v218
    %v987 = vmul.f32 %v955, %v219
    %v988 = vmul.f32 %v956, %v220
    %v989 = vmul.f32 %v957, %v221
    %v990 = vmul.f32 %v958, %v222
    %v991 = vmul.f32 %v959, %v223
    %v992 = vmul.f32 %v960, %v224
    %v993 = vmul.f32 %v961, %v225
    %v994 = vmul.f32 %v962, %v226
    %v995 = vmul.f32 %v963, %v227
    %v996 = vmul.f32 %v964, %v228
    %v997 = vmul.f32 %v965, %v229
    %v998 = vmul.f32 %v966, %v230
    %v999 = vmul.f32 %v967, %v231
    %v1000 = vmul.f32 %v968, %v232
    %v1001 = vmul.f32 %v969, %v233
    %v1002 = vmul.f32 %v970, %v234
    %v1003 = vmul.f32 %v971, %v43
    %v1004 = vmul.f32 %v972, %v44
    %v1005 = vmul.f32 %v973, %v45
    %v1006 = vmul.f32 %v974, %v46
    %v1007 = vmul.f32 %v975, %v47
    %v1008 = vmul.f32 %v976, %v48
    %v1009 = vmul.f32 %v977, %v49
    %v1010 = vmul.f32 %v978, %v50
    %v1011 = vmul.f32 %v979, %v51
    %v1012 = vmul.f32 %v980, %v52
    %v1013 = vmul.f32 %v981, %v53
    %v1014 = vmul.f32 %v982, %v54
    %v1015 = vmul.f32 %v983, %v55
    %v1016 = vmul.f32 %v984, %v56
    %v1017 = vmul.f32 %v985, %v57
    %v1018 = vmul.f32 %v986, %v58
    %v1019 = vmul.f32 %v987, %v59
    %v1020 = vmul.f32 %v988, %v60
    %v1021 = vmul.f32 %v989, %v61
    %v1022 = vmul.f32 %v990, %v62
    %v1023 = vmul.f32 %v991, %v63
    %v1024 = vmul.f32 %v992, %v64
    %v1025 = vmul.f32 %v993, %v65
    %v1026 = vmul.f32 %v994, %v66
    %v1027 = vmul.f32 %v995, %v67
    %v1028 = vmul.f32 %v996, %v68
    %v1029 = vmul.f32 %v997, %v69
    %v1030 = vmul.f32 %v998, %v70
    %v1031 = vmul.f32 %v999, %v71
    %v1032 = vmul.f32 %v1000, %v72
    %v1033 = vmul.f32 %v1001, %v73
    %v1034 = vmul.f32 %v1002, %v74
    %v1035 = vld [vmem:[#allocation5] sm:$0xff]
    %v1036 = vld [vmem:[#allocation5 + $0x8] sm:$0xff]
    %v1037 = vld [vmem:[#allocation5 + $0x10] sm:$0xff]
    %v1038 = vld [vmem:[#allocation5 + $0x18] sm:$0xff]
    %v1039 = vld [vmem:[#allocation5 + $0x20] sm:$0xff]
    %v1040 = vld [vmem:[#allocation5 + $0x28] sm:$0xff]
    %v1041 = vld [vmem:[#allocation5 + $0x30] sm:$0xff]
    %v1042 = vld [vmem:[#allocation5 + $0x38] sm:$0xff]
    %v1043 = vld [vmem:[#allocation5 + $0x40] sm:$0xff]
    %v1044 = vld [vmem:[#allocation5 + $0x48] sm:$0xff]
    %v1045 = vld [vmem:[#allocation5 + $0x50] sm:$0xff]
    %v1046 = vld [vmem:[#allocation5 + $0x58] sm:$0xff]
    %v1047 = vld [vmem:[#allocation5 + $0x60] sm:$0xff]
    %v1048 = vld [vmem:[#allocation5 + $0x68] sm:$0xff]
    %v1049 = vld [vmem:[#allocation5 + $0x70] sm:$0xff]
    %v1050 = vld [vmem:[#allocation5 + $0x78] sm:$0xff]
    %v1051 = vld [vmem:[%s2] sm:$0x1]
    %v1053 = vlaneseq
    %v1054 = vshrl.u32 %v1053, 7
    %v1055 = vsub.s32 0, %v1054
    %v1056 = vrot.slane %v1051, %v1055
    %1058 = vmatprep.subr.mxu0 0.0
    %1059 = vmatpush1.msra.mxu0 %v1050
    %1060 = vmatprep.subr.mxu0 0.0
    %1061 = vmatpush1.msra.mxu0 %v1049
    %1062 = vmatprep.subr.mxu0 0.0
    %1063 = vmatpush1.msra.mxu0 %v1048
    %1064 = vmatprep.subr.mxu0 0.0
    %1065 = vmatpush1.msra.mxu0 %v1047
    %1066 = vmatprep.subr.mxu0 0.0
    %1067 = vmatpush1.msra.mxu0 %v1046
    %1068 = vmatprep.subr.mxu0 0.0
    %1069 = vmatpush1.msra.mxu0 %v1045
    %1070 = vmatprep.subr.mxu0 0.0
    %1071 = vmatpush1.msra.mxu0 %v1044
    %1072 = vmatprep.subr.mxu0 0.0
    %1073 = vmatpush1.msra.mxu0 %v1043
    %1074 = vmatprep.subr.mxu0 0.0
    %1075 = vmatpush1.msra.mxu0 %v1042
    %1076 = vmatprep.subr.mxu0 0.0
    %1077 = vmatpush1.msra.mxu0 %v1041
    %1078 = vmatprep.subr.mxu0 0.0
    %1079 = vmatpush1.msra.mxu0 %v1040
    %1080 = vmatprep.subr.mxu0 0.0
    %1081 = vmatpush1.msra.mxu0 %v1039
    %1082 = vmatprep.subr.mxu0 0.0
    %1083 = vmatpush1.msra.mxu0 %v1038
    %1084 = vmatprep.subr.mxu0 0.0
    %1085 = vmatpush1.msra.mxu0 %v1037
    %1086 = vmatprep.subr.mxu0 0.0
    %1087 = vmatpush1.msra.mxu0 %v1036
    %1088 = vmatprep.subr.mxu0 0.0
    %1089 = vmatpush1.msra.mxu0 %v1035
    %1090 = vmatprep.subr.mxu0 0.0
    %1091 = vmatpush2.msra.mxu0 0.0
    %1092 = vmatprep.subr.mxu0 0.0
    %1093 = vmatpush2.msra.mxu0 0.0
    %1094 = vmatprep.subr.mxu0 0.0
    %1095 = vmatpush2.msra.mxu0 0.0
    %1096 = vmatprep.subr.mxu0 0.0
    %1097 = vmatpush2.msra.mxu0 0.0
    %1098 = vmatprep.subr.mxu0 0.0
    %1099 = vmatpush2.msra.mxu0 0.0
    %1100 = vmatprep.subr.mxu0 0.0
    %1101 = vmatpush2.msra.mxu0 0.0
    %1102 = vmatprep.subr.mxu0 0.0
    %1103 = vmatpush2.msra.mxu0 0.0
    %1104 = vmatprep.subr.mxu0 0.0
    %1105 = vmatpush2.msra.mxu0 0.0
    %1106 = vmatprep.subr.mxu0 0.0
    %1107 = vmatpush2.msra.mxu0 0.0
    %1108 = vmatprep.subr.mxu0 0.0
    %1109 = vmatpush2.msra.mxu0 0.0
    %1110 = vmatprep.subr.mxu0 0.0
    %1111 = vmatpush2.msra.mxu0 0.0
    %1112 = vmatprep.subr.mxu0 0.0
    %1113 = vmatpush2.msra.mxu0 0.0
    %1114 = vmatprep.subr.mxu0 0.0
    %1115 = vmatpush2.msra.mxu0 0.0
    %1116 = vmatprep.subr.mxu0 0.0
    %1117 = vmatpush2.msra.mxu0 0.0
    %1118 = vmatprep.subr.mxu0 0.0
    %1119 = vmatpush2.msra.mxu0 0.0
    %1120 = vmatprep.subr.mxu0 0.0
    %1121 = vmatpush2.msra.mxu0 0.0
    %1122 = vmatprep.mubr.f32.mxu0 0.0
    %1123 = vmatmul.mubr.f32.gmra.mxu0 %v1003
    %v1124 = vpop.f32.mrf.mxu0
    %v1125 = vadd.f32 %v1056, %v1124
    %v1126 = vpop.f32.mrf.mxu0
    %1127 = vmatprep.mubr.f32.mxu0 0.0
    %1128 = vmatmul.mubr.f32.gmra.mxu0 %v1004
    %v1129 = vpop.f32.mrf.mxu0
    %v1130 = vadd.f32 %v1056, %v1129
    %v1131 = vpop.f32.mrf.mxu0
    %1132 = vmatprep.mubr.f32.mxu0 0.0
    %1133 = vmatmul.mubr.f32.gmra.mxu0 %v1005
    %v1134 = vpop.f32.mrf.mxu0
    %v1135 = vadd.f32 %v1056, %v1134
    %v1136 = vpop.f32.mrf.mxu0
    %1137 = vmatprep.mubr.f32.mxu0 0.0
    %1138 = vmatmul.mubr.f32.gmra.mxu0 %v1006
    %v1139 = vpop.f32.mrf.mxu0
    %v1140 = vadd.f32 %v1056, %v1139
    %v1141 = vpop.f32.mrf.mxu0
    %1142 = vmatprep.mubr.f32.mxu0 0.0
    %1143 = vmatmul.mubr.f32.gmra.mxu0 %v1007
    %v1144 = vpop.f32.mrf.mxu0
    %v1145 = vadd.f32 %v1056, %v1144
    %v1146 = vpop.f32.mrf.mxu0
    %1147 = vmatprep.mubr.f32.mxu0 0.0
    %1148 = vmatmul.mubr.f32.gmra.mxu0 %v1008
    %v1149 = vpop.f32.mrf.mxu0
    %v1150 = vadd.f32 %v1056, %v1149
    %v1151 = vpop.f32.mrf.mxu0
    %1152 = vmatprep.mubr.f32.mxu0 0.0
    %1153 = vmatmul.mubr.f32.gmra.mxu0 %v1009
    %v1154 = vpop.f32.mrf.mxu0
    %v1155 = vadd.f32 %v1056, %v1154
    %v1156 = vpop.f32.mrf.mxu0
    %1157 = vmatprep.mubr.f32.mxu0 0.0
    %1158 = vmatmul.mubr.f32.gmra.mxu0 %v1010
    %v1159 = vpop.f32.mrf.mxu0
    %v1160 = vadd.f32 %v1056, %v1159
    %v1161 = vpop.f32.mrf.mxu0
    %1162 = vmatprep.mubr.f32.mxu0 0.0
    %1163 = vmatmul.mubr.f32.gmra.mxu0 %v1011
    %v1164 = vpop.f32.mrf.mxu0
    %v1165 = vadd.f32 %v1056, %v1164
    %v1166 = vpop.f32.mrf.mxu0
    %1167 = vmatprep.mubr.f32.mxu0 0.0
    %1168 = vmatmul.mubr.f32.gmra.mxu0 %v1012
    %v1169 = vpop.f32.mrf.mxu0
    %v1170 = vadd.f32 %v1056, %v1169
    %v1171 = vpop.f32.mrf.mxu0
    %1172 = vmatprep.mubr.f32.mxu0 0.0
    %1173 = vmatmul.mubr.f32.gmra.mxu0 %v1013
    %v1174 = vpop.f32.mrf.mxu0
    %v1175 = vadd.f32 %v1056, %v1174
    %v1176 = vpop.f32.mrf.mxu0
    %1177 = vmatprep.mubr.f32.mxu0 0.0
    %1178 = vmatmul.mubr.f32.gmra.mxu0 %v1014
    %v1179 = vpop.f32.mrf.mxu0
    %v1180 = vadd.f32 %v1056, %v1179
    %v1181 = vpop.f32.mrf.mxu0
    %1182 = vmatprep.mubr.f32.mxu0 0.0
    %1183 = vmatmul.mubr.f32.gmra.mxu0 %v1015
    %v1184 = vpop.f32.mrf.mxu0
    %v1185 = vadd.f32 %v1056, %v1184
    %v1186 = vpop.f32.mrf.mxu0
    %1187 = vmatprep.mubr.f32.mxu0 0.0
    %1188 = vmatmul.mubr.f32.gmra.mxu0 %v1016
    %v1189 = vpop.f32.mrf.mxu0
    %v1190 = vadd.f32 %v1056, %v1189
    %v1191 = vpop.f32.mrf.mxu0
    %1192 = vmatprep.mubr.f32.mxu0 0.0
    %1193 = vmatmul.mubr.f32.gmra.mxu0 %v1017
    %v1194 = vpop.f32.mrf.mxu0
    %v1195 = vadd.f32 %v1056, %v1194
    %v1196 = vpop.f32.mrf.mxu0
    %1197 = vmatprep.mubr.f32.mxu0 0.0
    %1198 = vmatmul.mubr.f32.gmra.mxu0 %v1018
    %v1199 = vpop.f32.mrf.mxu0
    %v1200 = vadd.f32 %v1056, %v1199
    %v1201 = vpop.f32.mrf.mxu0
    %1202 = vmatprep.mubr.f32.mxu0 0.0
    %1203 = vmatmul.mubr.f32.gmra.mxu0 %v1019
    %v1204 = vpop.f32.mrf.mxu0
    %v1205 = vadd.f32 %v1056, %v1204
    %v1206 = vpop.f32.mrf.mxu0
    %1207 = vmatprep.mubr.f32.mxu0 0.0
    %1208 = vmatmul.mubr.f32.gmra.mxu0 %v1020
    %v1209 = vpop.f32.mrf.mxu0
    %v1210 = vadd.f32 %v1056, %v1209
    %v1211 = vpop.f32.mrf.mxu0
    %1212 = vmatprep.mubr.f32.mxu0 0.0
    %1213 = vmatmul.mubr.f32.gmra.mxu0 %v1021
    %v1214 = vpop.f32.mrf.mxu0
    %v1215 = vadd.f32 %v1056, %v1214
    %v1216 = vpop.f32.mrf.mxu0
    %1217 = vmatprep.mubr.f32.mxu0 0.0
    %1218 = vmatmul.mubr.f32.gmra.mxu0 %v1022
    %v1219 = vpop.f32.mrf.mxu0
    %v1220 = vadd.f32 %v1056, %v1219
    %v1221 = vpop.f32.mrf.mxu0
    %1222 = vmatprep.mubr.f32.mxu0 0.0
    %1223 = vmatmul.mubr.f32.gmra.mxu0 %v1023
    %v1224 = vpop.f32.mrf.mxu0
    %v1225 = vadd.f32 %v1056, %v1224
    %v1226 = vpop.f32.mrf.mxu0
    %1227 = vmatprep.mubr.f32.mxu0 0.0
    %1228 = vmatmul.mubr.f32.gmra.mxu0 %v1024
    %v1229 = vpop.f32.mrf.mxu0
    %v1230 = vadd.f32 %v1056, %v1229
    %v1231 = vpop.f32.mrf.mxu0
    %1232 = vmatprep.mubr.f32.mxu0 0.0
    %1233 = vmatmul.mubr.f32.gmra.mxu0 %v1025
    %v1234 = vpop.f32.mrf.mxu0
    %v1235 = vadd.f32 %v1056, %v1234
    %v1236 = vpop.f32.mrf.mxu0
    %1237 = vmatprep.mubr.f32.mxu0 0.0
    %1238 = vmatmul.mubr.f32.gmra.mxu0 %v1026
    %v1239 = vpop.f32.mrf.mxu0
    %v1240 = vadd.f32 %v1056, %v1239
    %v1241 = vpop.f32.mrf.mxu0
    %1242 = vmatprep.mubr.f32.mxu0 0.0
    %1243 = vmatmul.mubr.f32.gmra.mxu0 %v1027
    %v1244 = vpop.f32.mrf.mxu0
    %v1245 = vadd.f32 %v1056, %v1244
    %v1246 = vpop.f32.mrf.mxu0
    %1247 = vmatprep.mubr.f32.mxu0 0.0
    %1248 = vmatmul.mubr.f32.gmra.mxu0 %v1028
    %v1249 = vpop.f32.mrf.mxu0
    %v1250 = vadd.f32 %v1056, %v1249
    %v1251 = vpop.f32.mrf.mxu0
    %1252 = vmatprep.mubr.f32.mxu0 0.0
    %1253 = vmatmul.mubr.f32.gmra.mxu0 %v1029
    %v1254 = vpop.f32.mrf.mxu0
    %v1255 = vadd.f32 %v1056, %v1254
    %v1256 = vpop.f32.mrf.mxu0
    %1257 = vmatprep.mubr.f32.mxu0 0.0
    %1258 = vmatmul.mubr.f32.gmra.mxu0 %v1030
    %v1259 = vpop.f32.mrf.mxu0
    %v1260 = vadd.f32 %v1056, %v1259
    %v1261 = vpop.f32.mrf.mxu0
    %1262 = vmatprep.mubr.f32.mxu0 0.0
    %1263 = vmatmul.mubr.f32.gmra.mxu0 %v1031
    %v1264 = vpop.f32.mrf.mxu0
    %v1265 = vadd.f32 %v1056, %v1264
    %v1266 = vpop.f32.mrf.mxu0
    %1267 = vmatprep.mubr.f32.mxu0 0.0
    %1268 = vmatmul.mubr.f32.gmra.mxu0 %v1032
    %v1269 = vpop.f32.mrf.mxu0
    %v1270 = vadd.f32 %v1056, %v1269
    %v1271 = vpop.f32.mrf.mxu0
    %1272 = vmatprep.mubr.f32.mxu0 0.0
    %1273 = vmatmul.mubr.f32.gmra.mxu0 %v1033
    %v1274 = vpop.f32.mrf.mxu0
    %v1275 = vadd.f32 %v1056, %v1274
    %v1276 = vpop.f32.mrf.mxu0
    %1277 = vmatprep.mubr.f32.mxu0 0.0
    %1278 = vmatmul.mubr.f32.gmra.mxu0 %v1034
    %v1279 = vpop.f32.mrf.mxu0
    %v1280 = vadd.f32 %v1056, %v1279
    %v1281 = vpop.f32.mrf.mxu0
    %1282 = vdwg.mxu0
    %1283 = vst [vmem:[#allocation7] sm:$0xff] %v1125
    %1284 = vst [vmem:[#allocation7 + $0x8] sm:$0xff] %v1130
    %1285 = vst [vmem:[#allocation7 + $0x10] sm:$0xff] %v1135
    %1286 = vst [vmem:[#allocation7 + $0x18] sm:$0xff] %v1140
    %1287 = vst [vmem:[#allocation7 + $0x20] sm:$0xff] %v1145
    %1288 = vst [vmem:[#allocation7 + $0x28] sm:$0xff] %v1150
    %1289 = vst [vmem:[#allocation7 + $0x30] sm:$0xff] %v1155
    %1290 = vst [vmem:[#allocation7 + $0x38] sm:$0xff] %v1160
    %1291 = vst [vmem:[#allocation7 + $0x40] sm:$0xff] %v1165
    %1292 = vst [vmem:[#allocation7 + $0x48] sm:$0xff] %v1170
    %1293 = vst [vmem:[#allocation7 + $0x50] sm:$0xff] %v1175
    %1294 = vst [vmem:[#allocation7 + $0x58] sm:$0xff] %v1180
    %1295 = vst [vmem:[#allocation7 + $0x60] sm:$0xff] %v1185
    %1296 = vst [vmem:[#allocation7 + $0x68] sm:$0xff] %v1190
    %1297 = vst [vmem:[#allocation7 + $0x70] sm:$0xff] %v1195
    %1298 = vst [vmem:[#allocation7 + $0x78] sm:$0xff] %v1200
    %1299 = vst [vmem:[#allocation7 + $0x80] sm:$0xff] %v1205
    %1300 = vst [vmem:[#allocation7 + $0x88] sm:$0xff] %v1210
    %1301 = vst [vmem:[#allocation7 + $0x90] sm:$0xff] %v1215
    %1302 = vst [vmem:[#allocation7 + $0x98] sm:$0xff] %v1220
    %1303 = vst [vmem:[#allocation7 + $0xa0] sm:$0xff] %v1225
    %1304 = vst [vmem:[#allocation7 + $0xa8] sm:$0xff] %v1230
    %1305 = vst [vmem:[#allocation7 + $0xb0] sm:$0xff] %v1235
    %1306 = vst [vmem:[#allocation7 + $0xb8] sm:$0xff] %v1240
    %1307 = vst [vmem:[#allocation7 + $0xc0] sm:$0xff] %v1245
    %1308 = vst [vmem:[#allocation7 + $0xc8] sm:$0xff] %v1250
    %1309 = vst [vmem:[#allocation7 + $0xd0] sm:$0xff] %v1255
    %1310 = vst [vmem:[#allocation7 + $0xd8] sm:$0xff] %v1260
    %1311 = vst [vmem:[#allocation7 + $0xe0] sm:$0xff] %v1265
    %1312 = vst [vmem:[#allocation7 + $0xe8] sm:$0xff] %v1270
    %1313 = vst [vmem:[#allocation7 + $0xf0] sm:$0xff] %v1275
    %1314 = vst [vmem:[#allocation7 + $0xf8] sm:$0xff] %v1280
    // Predicated region
    $region22: #{tpu_custom_call.1} parent=1 // pred_check
      _
    $region23: #{tpu_custom_call.1} parent=1 // pred_check_branch
      %1316 = sbr.rel (0) target = $region25
    $region24: #{tpu_custom_call.1} parent=1 // pred_region
      %s1318 = ssub.s32 4096, 4096
      %1319 = vsyncadd [#allocation4], %s1318
      %s1320 = sshll.u32 [#allocation7], 4
      %s1321 = int_to_ptr.vmem [resolvable:$true] %s1320
      %1326 = dma.vmem_to_hbm [thread:$0]  %s1321, 4096, %s3, [#allocation4], 128, 128, 8
    $region25: #{tpu_custom_call.1} parent=1 // pred_fallthru
      _
    // Predicated region
    $region26: #{tpu_custom_call.1} parent=1 // pred_check
      _
    $region27: #{tpu_custom_call.1} parent=1 // pred_check_branch
      %1328 = sbr.rel (0) target = $region29
    $region28: #{tpu_custom_call.1} parent=1 // pred_region
      %1329 = dma.done [#allocation4], 4096
    $region29: #{tpu_custom_call.1} parent=1 // pred_fallthru
      _
    %1330 = vsyncpa [#allocation3], 1
    %1331 = vsyncpa [#allocation6], 1
    %1332 = vsyncpa [#allocation4], 1

</llo_original>
